<compile_context>
chip_gen: v7x
topology: tpu7x:2x2x1
jax: 0.10.0
libtpu: 0.0.40
codegen_flags: <defaults>
</compile_context>

<pallas_src>
import jax
import jax.numpy as jnp
from jax import lax
from jax.experimental import pallas as pl
from jax.experimental.pallas import tpu as pltpu


def _lstm_kernel(x_ref, w_ih_ref, b_ref, w_hh_ref, h_out_ref, h_scr, c_scr):
    """One (batch block, time block) grid step of the LSTM recurrence.

    x_ref     : (T_blk, bb, 1)  raw inputs for this time block, f32
    w_ih_ref  : (1, 4H)         weight_ih_l0.T, f32
    b_ref     : (1, 4H)         bias_ih + bias_hh, f32
    w_hh_ref  : (H, 4H)         weight_hh_l0.T, pre-cast to matmul dtype
    h_out_ref : (bb, H)         final hidden state h_T for this batch block
    h_scr/c_scr: (bb, H) f32 VMEM scratch carrying state across time blocks
    """
    T_blk = x_ref.shape[0]
    H = w_hh_ref.shape[0]

    # Reset the carried state at the first time block of each batch block.
    @pl.when(pl.program_id(1) == 0)
    def _init():
        h_scr[...] = jnp.zeros_like(h_scr)
        c_scr[...] = jnp.zeros_like(c_scr)

    # Time-vectorized input projection for this block (VPU, off the serial chain):
    # gx[t] = x_t * w_ih + (b_ih + b_hh)   -> (T_blk, bb, 4H) f32
    x_blk = x_ref[...]                                   # (T_blk, bb, 1)
    w_ih = w_ih_ref[...]                                 # (1, 4H)
    bias = b_ref[...]                                    # (1, 4H)
    gx = x_blk * w_ih[None, :, :] + bias[None, :, :]     # (T_blk, bb, 4H)

    # Recurrent weight loaded once per grid step, already in matmul dtype.
    w_hh = w_hh_ref[...]                                 # (H, 4H)

    # State lives in vregs inside the unrolled loop; scratch only at block boundaries.
    h = h_scr[...]
    c = c_scr[...]

    # T_blk is a small compile-time constant (grid streams long T), so a full unroll
    # keeps code size bounded while giving the LLO scheduler full overlap freedom.
    for t in range(T_blk):
        z = gx[t] + jnp.dot(h.astype(w_hh.dtype), w_hh,
                            preferred_element_type=jnp.float32)      # (bb, 4H) f32
        # Full-width transcendentals (one sigmoid + one tanh EUP pass over the whole
        # 4H=128-lane gate vreg), then static quadrant slices in PyTorch [i|f|g|o] order.
        sig = jax.nn.sigmoid(z)
        tah = jnp.tanh(z)
        i = sig[:, 0 * H:1 * H]
        f = sig[:, 1 * H:2 * H]
        g = tah[:, 2 * H:3 * H]
        o = sig[:, 3 * H:4 * H]
        c = f * c + i * g
        h = o * jnp.tanh(c)

    # Persist state for the next time block; publish h (only the last block's value
    # survives, since the output block index is constant along the time axis).
    h_scr[...] = h
    c_scr[...] = c
    h_out_ref[...] = h


def lstm_forward(x, params, *, matmul_dtype=jnp.bfloat16, batch_blocks=1, time_block=32):
    """x: (T, B, 1) float32 -> (B, 1) float32 (matches the PyTorch module forward).

    batch_blocks: keep 1 on single-TC chips (v5e/v6e); use 2 on v7x for large B so the
    "parallel" batch axis maps exactly one block per TensorCore.
    time_block:   T is streamed through the grid in blocks of this size (bounds VMEM
    for long sequences; each block's x DMA is double-buffered by BlockSpec).
    """
    T, B, in_dim = x.shape
    assert in_dim == 1
    H = params["w_hh_T"].shape[0]

    assert B % batch_blocks == 0, "batch must divide evenly into batch blocks"
    bb = B // batch_blocks
    if batch_blocks > 1:
        assert bb % 8 == 0, "per-core batch block must be sublane-aligned (multiple of 8)"

    T_blk = T if T <= time_block else time_block
    assert T % T_blk == 0, "sequence length must be a multiple of the time block"
    nt = T // T_blk
    nb = batch_blocks

    x_f32 = x.astype(jnp.float32)
    w_ih = params["w_ih_T"].astype(jnp.float32)            # (1, 4H)
    bias = params["b"].astype(jnp.float32)                 # (1, 4H)
    w_hh = params["w_hh_T"].astype(matmul_dtype)           # (H, 4H), pre-cast once

    cost = pl.CostEstimate(
        flops=int(2 * T * B * H * 4 * H + 12 * T * B * 4 * H),
        transcendentals=int(9 * T * B * H),
        bytes_accessed=int(x_f32.size * 4 + w_ih.size * 4 + bias.size * 4
                           + w_hh.size * jnp.dtype(matmul_dtype).itemsize
                           + B * H * 4),
    )

    h_last = pl.pallas_call(
        _lstm_kernel,
        out_shape=jax.ShapeDtypeStruct((B, H), jnp.float32),
        grid=(nb, nt),  # batch outer (parallel across TCs), time inner (carried state)
        in_specs=[
            pl.BlockSpec((T_blk, bb, 1), lambda b, t: (t, b, 0)),   # raw x block
            pl.BlockSpec((1, 4 * H), lambda b, t: (0, 0)),          # w_ih.T (shared)
            pl.BlockSpec((1, 4 * H), lambda b, t: (0, 0)),          # combined bias
            pl.BlockSpec((H, 4 * H), lambda b, t: (0, 0)),          # w_hh.T (shared)
        ],
        out_specs=pl.BlockSpec((bb, H), lambda b, t: (b, 0)),
        scratch_shapes=[
            pltpu.VMEM((bb, H), jnp.float32),   # h carried across time blocks
            pltpu.VMEM((bb, H), jnp.float32),   # c carried across time blocks
        ],
        compiler_params=pltpu.CompilerParams(
            dimension_semantics=("parallel", "arbitrary")),
        cost_estimate=cost,
    )(x_f32, w_ih, bias, w_hh)

    # Final Linear(H, 1) on h_T, lane-dense input, trivial cost -> done in XLA.
    return h_last @ params["w_lin_T"] + params["b_lin"]


def init_params(key, hidden_size):
    """Deterministic init mimicking PyTorch shapes (uniform +-1/sqrt(H))."""
    H = hidden_size
    k = 1.0 / jnp.sqrt(jnp.float32(H))
    ks = jax.random.split(key, 6)
    weight_ih = jax.random.uniform(ks[0], (4 * H, 1), jnp.float32, -k, k)
    weight_hh = jax.random.uniform(ks[1], (4 * H, H), jnp.float32, -k, k)
    bias_ih = jax.random.uniform(ks[2], (4 * H,), jnp.float32, -k, k)
    bias_hh = jax.random.uniform(ks[3], (4 * H,), jnp.float32, -k, k)
    w_lin = jax.random.uniform(ks[4], (1, H), jnp.float32, -k, k)
    b_lin = jax.random.uniform(ks[5], (1,), jnp.float32, -k, k)
    return {
        "w_ih_T": weight_ih.T,                         # (1, 4H)
        "w_hh_T": weight_hh.T,                         # (H, 4H)
        "b": (bias_ih + bias_hh).reshape(1, 4 * H),    # (1, 4H)
        "w_lin_T": w_lin.T,                            # (H, 1)
        "b_lin": b_lin.reshape(1, 1),                  # (1, 1)
    }


def lstm_reference(x, params):
    """Pure-JAX (f32) reference of the PyTorch forward, for correctness checking."""
    T, B, _ = x.shape
    H = params["w_hh_T"].shape[0]
    h = jnp.zeros((B, H), jnp.float32)
    c = jnp.zeros((B, H), jnp.float32)

    def step(carry, x_t):
        h, c = carry
        gates = x_t @ params["w_ih_T"] + h @ params["w_hh_T"] + params["b"]
        i = jax.nn.sigmoid(gates[:, 0 * H:1 * H])
        f = jax.nn.sigmoid(gates[:, 1 * H:2 * H])
        g = jnp.tanh(gates[:, 2 * H:3 * H])
        o = jax.nn.sigmoid(gates[:, 3 * H:4 * H])
        c = f * c + i * g
        h = o * jnp.tanh(c)
        return (h, c), None

    (h, _), _ = lax.scan(step, (h, c), x)  # x: (T, B, 1)
    return h @ params["w_lin_T"] + params["b_lin"]


if __name__ == "__main__":
    T, B, H = 8, 2, 32
    key = jax.random.PRNGKey(0)
    k_x, k_p = jax.random.split(key)
    x = jax.random.normal(k_x, (T, B, 1), jnp.float32)   # (seq, batch, input=1)
    params = init_params(k_p, H)

    ref = lstm_reference(x, params)

    # Exact-semantics path: f32 MXU operands -> matches the pure-f32 reference tightly.
    out_f32 = jax.block_until_ready(lstm_forward(x, params, matmul_dtype=jnp.float32))
    assert out_f32.shape == (B, 1)
    assert jnp.allclose(out_f32, ref, atol=1e-5, rtol=1e-5), (out_f32, ref)

    # Performance path: bf16 recurrent-matmul operands, f32 state/accumulation.
    # (For very long T, validate bf16 drift or keep matmul_dtype=f32; K=H=32 is cheap.)
    out_bf16 = jax.block_until_ready(lstm_forward(x, params))
    assert out_bf16.shape == (B, 1)
    assert jnp.allclose(out_bf16, ref, atol=5e-2, rtol=5e-2), (out_bf16, ref)

    print("KERNEL_OK")
</pallas_src>

<mosaic_0001>
module attributes {stable_mosaic.version = 11 : i64} {
  func.func @_lstm_kernel(%arg0: i32, %arg1: i32, %arg2: memref<8x2x1xf32, #tpu.memory_space<vmem>>, %arg3: memref<1x128xf32, #tpu.memory_space<vmem>>, %arg4: memref<1x128xf32, #tpu.memory_space<vmem>>, %arg5: memref<32x128xf32, #tpu.memory_space<vmem>>, %arg6: memref<2x32xf32, #tpu.memory_space<vmem>>, %arg7: memref<2x32xf32, #tpu.memory_space<vmem>>, %arg8: memref<2x32xf32, #tpu.memory_space<vmem>>) attributes {dimension_semantics = [#tpu.dimension_semantics<parallel>, #tpu.dimension_semantics<arbitrary>], iteration_bounds = array<i64: 1, 1>, scalar_prefetch = 0 : i64, scratch_operands = 2 : i64, tpu.core_type = #tpu.core_type<tc>, window_params = [{transform_indices = @transform_0, window_bounds = array<i64: 8, 2, 1>}, {pipeline_mode = #tpu.pipeline_mode<synchronous>, transform_indices = @transform_1, window_bounds = array<i64: 1, 128>}, {pipeline_mode = #tpu.pipeline_mode<synchronous>, transform_indices = @transform_2, window_bounds = array<i64: 1, 128>}, {pipeline_mode = #tpu.pipeline_mode<synchronous>, transform_indices = @transform_3, window_bounds = array<i64: 32, 128>}, {transform_indices = @transform_4, window_bounds = array<i64: 2, 32>}]} {
    %c0_i32 = arith.constant 0 : i32
    %0 = arith.cmpi eq, %arg1, %c0_i32 : i32
    %1 = arith.extui %0 : i1 to i32
    %c0_i32_0 = arith.constant 0 : i32
    %2 = arith.cmpi ne, %1, %c0_i32_0 : i32
    scf.if %2 {
      %cst_34 = arith.constant 0.000000e+00 : f32
      %171 = vector.broadcast %cst_34 : f32 to vector<2x32xf32>
      %c0_35 = arith.constant 0 : index
      %c0_36 = arith.constant 0 : index
      %172 = vector.load %arg7[%c0_35, %c0_36] : memref<2x32xf32, #tpu.memory_space<vmem>>, vector<2x32xf32>
      tpu.vector_store %arg7[%c0_35, %c0_36], %171 {strides = array<i32>} : memref<2x32xf32, #tpu.memory_space<vmem>>, vector<2x32xf32>,
      %cst_37 = arith.constant 0.000000e+00 : f32
      %173 = vector.broadcast %cst_37 : f32 to vector<2x32xf32>
      %c0_38 = arith.constant 0 : index
      %c0_39 = arith.constant 0 : index
      %174 = vector.load %arg8[%c0_38, %c0_39] : memref<2x32xf32, #tpu.memory_space<vmem>>, vector<2x32xf32>
      tpu.vector_store %arg8[%c0_38, %c0_39], %173 {strides = array<i32>} : memref<2x32xf32, #tpu.memory_space<vmem>>, vector<2x32xf32>,
    } else {
    }
    %c0 = arith.constant 0 : index
    %c0_1 = arith.constant 0 : index
    %c0_2 = arith.constant 0 : index
    %3 = vector.load %arg2[%c0, %c0_1, %c0_2] : memref<8x2x1xf32, #tpu.memory_space<vmem>>, vector<8x2x1xf32>
    %c0_3 = arith.constant 0 : index
    %c0_4 = arith.constant 0 : index
    %4 = vector.load %arg3[%c0_3, %c0_4] : memref<1x128xf32, #tpu.memory_space<vmem>>, vector<1x128xf32>
    %c0_5 = arith.constant 0 : index
    %c0_6 = arith.constant 0 : index
    %5 = vector.load %arg4[%c0_5, %c0_6] : memref<1x128xf32, #tpu.memory_space<vmem>>, vector<1x128xf32>
    %6 = vector.shape_cast %4 : vector<1x128xf32> to vector<1x1x128xf32>
    %7 = vector.broadcast %3 : vector<8x2x1xf32> to vector<8x2x128xf32>
    %8 = vector.broadcast %6 : vector<1x1x128xf32> to vector<8x2x128xf32>
    %9 = arith.mulf %7, %8 : vector<8x2x128xf32>
    %10 = vector.shape_cast %5 : vector<1x128xf32> to vector<1x1x128xf32>
    %11 = vector.broadcast %10 : vector<1x1x128xf32> to vector<8x2x128xf32>
    %12 = arith.addf %9, %11 : vector<8x2x128xf32>
    %c0_7 = arith.constant 0 : index
    %c0_8 = arith.constant 0 : index
    %13 = vector.load %arg5[%c0_7, %c0_8] : memref<32x128xf32, #tpu.memory_space<vmem>>, vector<32x128xf32>
    %c0_9 = arith.constant 0 : index
    %c0_10 = arith.constant 0 : index
    %14 = vector.load %arg7[%c0_9, %c0_10] : memref<2x32xf32, #tpu.memory_space<vmem>>, vector<2x32xf32>
    %c0_11 = arith.constant 0 : index
    %c0_12 = arith.constant 0 : index
    %15 = vector.load %arg8[%c0_11, %c0_12] : memref<2x32xf32, #tpu.memory_space<vmem>>, vector<2x32xf32>
    %16 = vector.extract_strided_slice %12 {offsets = [0, 0, 0], sizes = [1, 2, 128], strides = [1, 1, 1]} : vector<8x2x128xf32> to vector<1x2x128xf32>
    %17 = vector.shape_cast %16 : vector<1x2x128xf32> to vector<2x128xf32>
    %cst = arith.constant dense<0.000000e+00> : vector<2x128xf32>
    %18 = tpu.matmul %14, %13, %cst {dimension_numbers = #tpu.dot_dimension_numbers<[1], [0], [0], [1], [0, 0, 1, 1], [], []>} : vector<2x32xf32>, vector<32x128xf32>, vector<2x128xf32> -> vector<2x128xf32>
    %19 = arith.addf %17, %18 : vector<2x128xf32>
    %20 = arith.negf %19 : vector<2x128xf32>
    %21 = math.exp %20 : vector<2x128xf32>
    %cst_13 = arith.constant 1.000000e+00 : f32
    %22 = vector.broadcast %cst_13 : f32 to vector<2x128xf32>
    %23 = arith.addf %22, %21 : vector<2x128xf32>
    %24 = arith.divf %22, %23 : vector<2x128xf32>
    %25 = math.tanh %19 : vector<2x128xf32>
    %26 = vector.extract_strided_slice %24 {offsets = [0, 0], sizes = [2, 32], strides = [1, 1]} : vector<2x128xf32> to vector<2x32xf32>
    %27 = vector.extract_strided_slice %24 {offsets = [0, 32], sizes = [2, 32], strides = [1, 1]} : vector<2x128xf32> to vector<2x32xf32>
    %28 = vector.extract_strided_slice %25 {offsets = [0, 64], sizes = [2, 32], strides = [1, 1]} : vector<2x128xf32> to vector<2x32xf32>
    %29 = vector.extract_strided_slice %24 {offsets = [0, 96], sizes = [2, 32], strides = [1, 1]} : vector<2x128xf32> to vector<2x32xf32>
    %30 = arith.mulf %27, %15 : vector<2x32xf32>
    %31 = arith.mulf %26, %28 : vector<2x32xf32>
    %32 = arith.addf %30, %31 : vector<2x32xf32>
    %33 = math.tanh %32 : vector<2x32xf32>
    %34 = arith.mulf %29, %33 : vector<2x32xf32>
    %35 = vector.extract_strided_slice %12 {offsets = [1, 0, 0], sizes = [1, 2, 128], strides = [1, 1, 1]} : vector<8x2x128xf32> to vector<1x2x128xf32>
    %36 = vector.shape_cast %35 : vector<1x2x128xf32> to vector<2x128xf32>
    %cst_14 = arith.constant dense<0.000000e+00> : vector<2x128xf32>
    %37 = tpu.matmul %34, %13, %cst_14 {dimension_numbers = #tpu.dot_dimension_numbers<[1], [0], [0], [1], [0, 0, 1, 1], [], []>} : vector<2x32xf32>, vector<32x128xf32>, vector<2x128xf32> -> vector<2x128xf32>
    %38 = arith.addf %36, %37 : vector<2x128xf32>
    %39 = arith.negf %38 : vector<2x128xf32>
    %40 = math.exp %39 : vector<2x128xf32>
    %cst_15 = arith.constant 1.000000e+00 : f32
    %41 = vector.broadcast %cst_15 : f32 to vector<2x128xf32>
    %42 = arith.addf %41, %40 : vector<2x128xf32>
    %43 = arith.divf %41, %42 : vector<2x128xf32>
    %44 = math.tanh %38 : vector<2x128xf32>
    %45 = vector.extract_strided_slice %43 {offsets = [0, 0], sizes = [2, 32], strides = [1, 1]} : vector<2x128xf32> to vector<2x32xf32>
    %46 = vector.extract_strided_slice %43 {offsets = [0, 32], sizes = [2, 32], strides = [1, 1]} : vector<2x128xf32> to vector<2x32xf32>
    %47 = vector.extract_strided_slice %44 {offsets = [0, 64], sizes = [2, 32], strides = [1, 1]} : vector<2x128xf32> to vector<2x32xf32>
    %48 = vector.extract_strided_slice %43 {offsets = [0, 96], sizes = [2, 32], strides = [1, 1]} : vector<2x128xf32> to vector<2x32xf32>
    %49 = arith.mulf %46, %32 : vector<2x32xf32>
    %50 = arith.mulf %45, %47 : vector<2x32xf32>
    %51 = arith.addf %49, %50 : vector<2x32xf32>
    %52 = math.tanh %51 : vector<2x32xf32>
    %53 = arith.mulf %48, %52 : vector<2x32xf32>
    %54 = vector.extract_strided_slice %12 {offsets = [2, 0, 0], sizes = [1, 2, 128], strides = [1, 1, 1]} : vector<8x2x128xf32> to vector<1x2x128xf32>
    %55 = vector.shape_cast %54 : vector<1x2x128xf32> to vector<2x128xf32>
    %cst_16 = arith.constant dense<0.000000e+00> : vector<2x128xf32>
    %56 = tpu.matmul %53, %13, %cst_16 {dimension_numbers = #tpu.dot_dimension_numbers<[1], [0], [0], [1], [0, 0, 1, 1], [], []>} : vector<2x32xf32>, vector<32x128xf32>, vector<2x128xf32> -> vector<2x128xf32>
    %57 = arith.addf %55, %56 : vector<2x128xf32>
    %58 = arith.negf %57 : vector<2x128xf32>
    %59 = math.exp %58 : vector<2x128xf32>
    %cst_17 = arith.constant 1.000000e+00 : f32
    %60 = vector.broadcast %cst_17 : f32 to vector<2x128xf32>
    %61 = arith.addf %60, %59 : vector<2x128xf32>
    %62 = arith.divf %60, %61 : vector<2x128xf32>
    %63 = math.tanh %57 : vector<2x128xf32>
    %64 = vector.extract_strided_slice %62 {offsets = [0, 0], sizes = [2, 32], strides = [1, 1]} : vector<2x128xf32> to vector<2x32xf32>
    %65 = vector.extract_strided_slice %62 {offsets = [0, 32], sizes = [2, 32], strides = [1, 1]} : vector<2x128xf32> to vector<2x32xf32>
    %66 = vector.extract_strided_slice %63 {offsets = [0, 64], sizes = [2, 32], strides = [1, 1]} : vector<2x128xf32> to vector<2x32xf32>
    %67 = vector.extract_strided_slice %62 {offsets = [0, 96], sizes = [2, 32], strides = [1, 1]} : vector<2x128xf32> to vector<2x32xf32>
    %68 = arith.mulf %65, %51 : vector<2x32xf32>
    %69 = arith.mulf %64, %66 : vector<2x32xf32>
    %70 = arith.addf %68, %69 : vector<2x32xf32>
    %71 = math.tanh %70 : vector<2x32xf32>
    %72 = arith.mulf %67, %71 : vector<2x32xf32>
    %73 = vector.extract_strided_slice %12 {offsets = [3, 0, 0], sizes = [1, 2, 128], strides = [1, 1, 1]} : vector<8x2x128xf32> to vector<1x2x128xf32>
    %74 = vector.shape_cast %73 : vector<1x2x128xf32> to vector<2x128xf32>
    %cst_18 = arith.constant dense<0.000000e+00> : vector<2x128xf32>
    %75 = tpu.matmul %72, %13, %cst_18 {dimension_numbers = #tpu.dot_dimension_numbers<[1], [0], [0], [1], [0, 0, 1, 1], [], []>} : vector<2x32xf32>, vector<32x128xf32>, vector<2x128xf32> -> vector<2x128xf32>
    %76 = arith.addf %74, %75 : vector<2x128xf32>
    %77 = arith.negf %76 : vector<2x128xf32>
    %78 = math.exp %77 : vector<2x128xf32>
    %cst_19 = arith.constant 1.000000e+00 : f32
    %79 = vector.broadcast %cst_19 : f32 to vector<2x128xf32>
    %80 = arith.addf %79, %78 : vector<2x128xf32>
    %81 = arith.divf %79, %80 : vector<2x128xf32>
    %82 = math.tanh %76 : vector<2x128xf32>
    %83 = vector.extract_strided_slice %81 {offsets = [0, 0], sizes = [2, 32], strides = [1, 1]} : vector<2x128xf32> to vector<2x32xf32>
    %84 = vector.extract_strided_slice %81 {offsets = [0, 32], sizes = [2, 32], strides = [1, 1]} : vector<2x128xf32> to vector<2x32xf32>
    %85 = vector.extract_strided_slice %82 {offsets = [0, 64], sizes = [2, 32], strides = [1, 1]} : vector<2x128xf32> to vector<2x32xf32>
    %86 = vector.extract_strided_slice %81 {offsets = [0, 96], sizes = [2, 32], strides = [1, 1]} : vector<2x128xf32> to vector<2x32xf32>
    %87 = arith.mulf %84, %70 : vector<2x32xf32>
    %88 = arith.mulf %83, %85 : vector<2x32xf32>
    %89 = arith.addf %87, %88 : vector<2x32xf32>
    %90 = math.tanh %89 : vector<2x32xf32>
    %91 = arith.mulf %86, %90 : vector<2x32xf32>
    %92 = vector.extract_strided_slice %12 {offsets = [4, 0, 0], sizes = [1, 2, 128], strides = [1, 1, 1]} : vector<8x2x128xf32> to vector<1x2x128xf32>
    %93 = vector.shape_cast %92 : vector<1x2x128xf32> to vector<2x128xf32>
    %cst_20 = arith.constant dense<0.000000e+00> : vector<2x128xf32>
    %94 = tpu.matmul %91, %13, %cst_20 {dimension_numbers = #tpu.dot_dimension_numbers<[1], [0], [0], [1], [0, 0, 1, 1], [], []>} : vector<2x32xf32>, vector<32x128xf32>, vector<2x128xf32> -> vector<2x128xf32>
    %95 = arith.addf %93, %94 : vector<2x128xf32>
    %96 = arith.negf %95 : vector<2x128xf32>
    %97 = math.exp %96 : vector<2x128xf32>
    %cst_21 = arith.constant 1.000000e+00 : f32
    %98 = vector.broadcast %cst_21 : f32 to vector<2x128xf32>
    %99 = arith.addf %98, %97 : vector<2x128xf32>
    %100 = arith.divf %98, %99 : vector<2x128xf32>
    %101 = math.tanh %95 : vector<2x128xf32>
    %102 = vector.extract_strided_slice %100 {offsets = [0, 0], sizes = [2, 32], strides = [1, 1]} : vector<2x128xf32> to vector<2x32xf32>
    %103 = vector.extract_strided_slice %100 {offsets = [0, 32], sizes = [2, 32], strides = [1, 1]} : vector<2x128xf32> to vector<2x32xf32>
    %104 = vector.extract_strided_slice %101 {offsets = [0, 64], sizes = [2, 32], strides = [1, 1]} : vector<2x128xf32> to vector<2x32xf32>
    %105 = vector.extract_strided_slice %100 {offsets = [0, 96], sizes = [2, 32], strides = [1, 1]} : vector<2x128xf32> to vector<2x32xf32>
    %106 = arith.mulf %103, %89 : vector<2x32xf32>
    %107 = arith.mulf %102, %104 : vector<2x32xf32>
    %108 = arith.addf %106, %107 : vector<2x32xf32>
    %109 = math.tanh %108 : vector<2x32xf32>
    %110 = arith.mulf %105, %109 : vector<2x32xf32>
    %111 = vector.extract_strided_slice %12 {offsets = [5, 0, 0], sizes = [1, 2, 128], strides = [1, 1, 1]} : vector<8x2x128xf32> to vector<1x2x128xf32>
    %112 = vector.shape_cast %111 : vector<1x2x128xf32> to vector<2x128xf32>
    %cst_22 = arith.constant dense<0.000000e+00> : vector<2x128xf32>
    %113 = tpu.matmul %110, %13, %cst_22 {dimension_numbers = #tpu.dot_dimension_numbers<[1], [0], [0], [1], [0, 0, 1, 1], [], []>} : vector<2x32xf32>, vector<32x128xf32>, vector<2x128xf32> -> vector<2x128xf32>
    %114 = arith.addf %112, %113 : vector<2x128xf32>
    %115 = arith.negf %114 : vector<2x128xf32>
    %116 = math.exp %115 : vector<2x128xf32>
    %cst_23 = arith.constant 1.000000e+00 : f32
    %117 = vector.broadcast %cst_23 : f32 to vector<2x128xf32>
    %118 = arith.addf %117, %116 : vector<2x128xf32>
    %119 = arith.divf %117, %118 : vector<2x128xf32>
    %120 = math.tanh %114 : vector<2x128xf32>
    %121 = vector.extract_strided_slice %119 {offsets = [0, 0], sizes = [2, 32], strides = [1, 1]} : vector<2x128xf32> to vector<2x32xf32>
    %122 = vector.extract_strided_slice %119 {offsets = [0, 32], sizes = [2, 32], strides = [1, 1]} : vector<2x128xf32> to vector<2x32xf32>
    %123 = vector.extract_strided_slice %120 {offsets = [0, 64], sizes = [2, 32], strides = [1, 1]} : vector<2x128xf32> to vector<2x32xf32>
    %124 = vector.extract_strided_slice %119 {offsets = [0, 96], sizes = [2, 32], strides = [1, 1]} : vector<2x128xf32> to vector<2x32xf32>
    %125 = arith.mulf %122, %108 : vector<2x32xf32>
    %126 = arith.mulf %121, %123 : vector<2x32xf32>
    %127 = arith.addf %125, %126 : vector<2x32xf32>
    %128 = math.tanh %127 : vector<2x32xf32>
    %129 = arith.mulf %124, %128 : vector<2x32xf32>
    %130 = vector.extract_strided_slice %12 {offsets = [6, 0, 0], sizes = [1, 2, 128], strides = [1, 1, 1]} : vector<8x2x128xf32> to vector<1x2x128xf32>
    %131 = vector.shape_cast %130 : vector<1x2x128xf32> to vector<2x128xf32>
    %cst_24 = arith.constant dense<0.000000e+00> : vector<2x128xf32>
    %132 = tpu.matmul %129, %13, %cst_24 {dimension_numbers = #tpu.dot_dimension_numbers<[1], [0], [0], [1], [0, 0, 1, 1], [], []>} : vector<2x32xf32>, vector<32x128xf32>, vector<2x128xf32> -> vector<2x128xf32>
    %133 = arith.addf %131, %132 : vector<2x128xf32>
    %134 = arith.negf %133 : vector<2x128xf32>
    %135 = math.exp %134 : vector<2x128xf32>
    %cst_25 = arith.constant 1.000000e+00 : f32
    %136 = vector.broadcast %cst_25 : f32 to vector<2x128xf32>
    %137 = arith.addf %136, %135 : vector<2x128xf32>
    %138 = arith.divf %136, %137 : vector<2x128xf32>
    %139 = math.tanh %133 : vector<2x128xf32>
    %140 = vector.extract_strided_slice %138 {offsets = [0, 0], sizes = [2, 32], strides = [1, 1]} : vector<2x128xf32> to vector<2x32xf32>
    %141 = vector.extract_strided_slice %138 {offsets = [0, 32], sizes = [2, 32], strides = [1, 1]} : vector<2x128xf32> to vector<2x32xf32>
    %142 = vector.extract_strided_slice %139 {offsets = [0, 64], sizes = [2, 32], strides = [1, 1]} : vector<2x128xf32> to vector<2x32xf32>
    %143 = vector.extract_strided_slice %138 {offsets = [0, 96], sizes = [2, 32], strides = [1, 1]} : vector<2x128xf32> to vector<2x32xf32>
    %144 = arith.mulf %141, %127 : vector<2x32xf32>
    %145 = arith.mulf %140, %142 : vector<2x32xf32>
    %146 = arith.addf %144, %145 : vector<2x32xf32>
    %147 = math.tanh %146 : vector<2x32xf32>
    %148 = arith.mulf %143, %147 : vector<2x32xf32>
    %149 = vector.extract_strided_slice %12 {offsets = [7, 0, 0], sizes = [1, 2, 128], strides = [1, 1, 1]} : vector<8x2x128xf32> to vector<1x2x128xf32>
    %150 = vector.shape_cast %149 : vector<1x2x128xf32> to vector<2x128xf32>
    %cst_26 = arith.constant dense<0.000000e+00> : vector<2x128xf32>
    %151 = tpu.matmul %148, %13, %cst_26 {dimension_numbers = #tpu.dot_dimension_numbers<[1], [0], [0], [1], [0, 0, 1, 1], [], []>} : vector<2x32xf32>, vector<32x128xf32>, vector<2x128xf32> -> vector<2x128xf32>
    %152 = arith.addf %150, %151 : vector<2x128xf32>
    %153 = arith.negf %152 : vector<2x128xf32>
    %154 = math.exp %153 : vector<2x128xf32>
    %cst_27 = arith.constant 1.000000e+00 : f32
    %155 = vector.broadcast %cst_27 : f32 to vector<2x128xf32>
    %156 = arith.addf %155, %154 : vector<2x128xf32>
    %157 = arith.divf %155, %156 : vector<2x128xf32>
    %158 = math.tanh %152 : vector<2x128xf32>
    %159 = vector.extract_strided_slice %157 {offsets = [0, 0], sizes = [2, 32], strides = [1, 1]} : vector<2x128xf32> to vector<2x32xf32>
    %160 = vector.extract_strided_slice %157 {offsets = [0, 32], sizes = [2, 32], strides = [1, 1]} : vector<2x128xf32> to vector<2x32xf32>
    %161 = vector.extract_strided_slice %158 {offsets = [0, 64], sizes = [2, 32], strides = [1, 1]} : vector<2x128xf32> to vector<2x32xf32>
    %162 = vector.extract_strided_slice %157 {offsets = [0, 96], sizes = [2, 32], strides = [1, 1]} : vector<2x128xf32> to vector<2x32xf32>
    %163 = arith.mulf %160, %146 : vector<2x32xf32>
    %164 = arith.mulf %159, %161 : vector<2x32xf32>
    %165 = arith.addf %163, %164 : vector<2x32xf32>
    %166 = math.tanh %165 : vector<2x32xf32>
    %167 = arith.mulf %162, %166 : vector<2x32xf32>
    %c0_28 = arith.constant 0 : index
    %c0_29 = arith.constant 0 : index
    %168 = vector.load %arg7[%c0_28, %c0_29] : memref<2x32xf32, #tpu.memory_space<vmem>>, vector<2x32xf32>
    tpu.vector_store %arg7[%c0_28, %c0_29], %167 {strides = array<i32>} : memref<2x32xf32, #tpu.memory_space<vmem>>, vector<2x32xf32>,
    %c0_30 = arith.constant 0 : index
    %c0_31 = arith.constant 0 : index
    %169 = vector.load %arg8[%c0_30, %c0_31] : memref<2x32xf32, #tpu.memory_space<vmem>>, vector<2x32xf32>
    tpu.vector_store %arg8[%c0_30, %c0_31], %165 {strides = array<i32>} : memref<2x32xf32, #tpu.memory_space<vmem>>, vector<2x32xf32>,
    %c0_32 = arith.constant 0 : index
    %c0_33 = arith.constant 0 : index
    %170 = vector.load %arg6[%c0_32, %c0_33] : memref<2x32xf32, #tpu.memory_space<vmem>>, vector<2x32xf32>
    tpu.vector_store %arg6[%c0_32, %c0_33], %167 {strides = array<i32>} : memref<2x32xf32, #tpu.memory_space<vmem>>, vector<2x32xf32>,
    return
  }
  func.func @transform_0(%arg0: i32, %arg1: i32) -> (i32, i32, i32) {
    %c0_i32 = arith.constant 0 : i32
    %c0_i32_0 = arith.constant 0 : i32
    return %arg1, %arg0, %c0_i32 : i32, i32, i32
  }
  func.func @transform_1(%arg0: i32, %arg1: i32) -> (i32, i32) {
    %c0_i32 = arith.constant 0 : i32
    %c0_i32_0 = arith.constant 0 : i32
    %c0_i32_1 = arith.constant 0 : i32
    return %c0_i32, %c0_i32_0 : i32, i32
  }
  func.func @transform_2(%arg0: i32, %arg1: i32) -> (i32, i32) {
    %c0_i32 = arith.constant 0 : i32
    %c0_i32_0 = arith.constant 0 : i32
    %c0_i32_1 = arith.constant 0 : i32
    return %c0_i32, %c0_i32_0 : i32, i32
  }
  func.func @transform_3(%arg0: i32, %arg1: i32) -> (i32, i32) {
    %c0_i32 = arith.constant 0 : i32
    %c0_i32_0 = arith.constant 0 : i32
    %c0_i32_1 = arith.constant 0 : i32
    return %c0_i32, %c0_i32_0 : i32, i32
  }
  func.func @transform_4(%arg0: i32, %arg1: i32) -> (i32, i32) {
    %c0_i32 = arith.constant 0 : i32
    %c0_i32_0 = arith.constant 0 : i32
    return %arg0, %c0_i32 : i32, i32
  }
}

</mosaic_0001>

<llo_original>
// kernel: tpu_custom_call.1
$region0: #{tpu_custom_call.1}
  #allocation0 [shape = 'u32[]', space=smem, size = 0x4, offset = 0x4, fixed_abs, tag = 'smem constant byte address 0x4 - core index']
  #allocation1 [shape = 'u32[144,128]{1,0:T(1,128)}', space=vmem, size = 0x12000, scoped, tag = 'internal scratch']
  #allocation2 [shape = 'f32[2,32]{1,0:T(2,128)}', space=vmem, size = 0x400, scoped, tag = 'scratch operand']
  #allocation3 [shape = 'f32[2,32]{1,0:T(2,128)}', space=vmem, size = 0x400, scoped, tag = 'scratch operand']
  %s0 = inlined_call_operand.vmem [shape: f32[8,2,1], index: 0, kind: input, shape index: {}]
  %s1 = inlined_call_operand.vmem [shape: f32[1,128], index: 1, kind: input, shape index: {}]
  %s2 = inlined_call_operand.vmem [shape: f32[1,128], index: 2, kind: input, shape index: {}]
  %s3 = inlined_call_operand.hbm [shape: f32[32,128], index: 3, kind: input, shape index: {}]
  %s4 = inlined_call_operand.hbm [shape: f32[2,32], index: 4, kind: output, shape index: {}]
  %s5 = sld [smem:[#allocation0]]
  $region34: #{tpu_custom_call.1} parent=0
    _
  %s7 = ssub.s32 1, %s5
  %s8 = scalar_select 0, %s7, %s5
  $region1: #{tpu_custom_call.1} parent=0
    #allocation4 [shape = 'u8[16384]{0}', space=vmem, size = 0x4000, scoped, tag = 'input window, operand 3, single buffered']
    #allocation5 [shape = 's32[1]{0}', space=sflag, size = 0x4, scoped, tag = 'scoped memory for tpu_custom_call.1']
    #allocation6 [shape = 's32[1]{0}', space=sflag, size = 0x4, scoped, tag = 'scoped memory for tpu_custom_call.1']
    #allocation7 [shape = 'u8[1024]{0}', space=vmem, size = 0x400, scoped, tag = 'output window, operand 0, single buffered']
    %9 = vsyncpa [#allocation5], 0
    %10 = vsyncpa [#allocation6], 0
    // Predicated region
    $region2: #{tpu_custom_call.1} parent=1 // pred_check
      _
    $region3: #{tpu_custom_call.1} parent=1 // pred_check_branch
      %12 = sbr.rel (0) target = $region5
    $region4: #{tpu_custom_call.1} parent=1 // pred_region
      _
    $region5: #{tpu_custom_call.1} parent=1 // pred_fallthru
      _
    // Predicated region
    $region6: #{tpu_custom_call.1} parent=1 // pred_check
      _
    $region7: #{tpu_custom_call.1} parent=1 // pred_check_branch
      %14 = sbr.rel (0) target = $region9
    $region8: #{tpu_custom_call.1} parent=1 // pred_region
      _
    $region9: #{tpu_custom_call.1} parent=1 // pred_fallthru
      _
    // Predicated region
    $region10: #{tpu_custom_call.1} parent=1 // pred_check
      _
    $region11: #{tpu_custom_call.1} parent=1 // pred_check_branch
      %16 = sbr.rel (0) target = $region13
    $region12: #{tpu_custom_call.1} parent=1 // pred_region
      _
    $region13: #{tpu_custom_call.1} parent=1 // pred_fallthru
      _
    // Predicated region
    $region14: #{tpu_custom_call.1} parent=1 // pred_check
      _
    $region15: #{tpu_custom_call.1} parent=1 // pred_check_branch
      %18 = sbr.rel (0) target = $region17
    $region16: #{tpu_custom_call.1} parent=1 // pred_region
      %s20 = ssub.s32 512, 512
      %21 = vsyncadd [#allocation5], %s20
      %s22 = sshll.u32 [#allocation4], 4
      %s23 = int_to_ptr.vmem [resolvable:$true] %s22
      %28 = dma.hbm_to_vmem [thread:$0]  %s3, 512, %s23, [#allocation5], 128, 128, 8
    $region17: #{tpu_custom_call.1} parent=1 // pred_fallthru
      _
    // Predicated region
    $region18: #{tpu_custom_call.1} parent=1 // pred_check
      _
    $region19: #{tpu_custom_call.1} parent=1 // pred_check_branch
      %30 = sbr.rel (0) target = $region21
    $region20: #{tpu_custom_call.1} parent=1 // pred_region
      %31 = dma.done [#allocation5], 512
    $region21: #{tpu_custom_call.1} parent=1 // pred_fallthru
      _
    %p32 = scmp.eq.s32.totalorder 0, 0
    // Predicated region
    $region22: #{tpu_custom_call.1} parent=1 // pred_check
      %p33 = pneg %p32
    $region23: #{tpu_custom_call.1} parent=1 // pred_check_branch
      %35 = sbr.rel (%p33) target = $region25
    $region24: #{tpu_custom_call.1} parent=1 // pred_region
      %vm36 = vcmask 254976
      %37 = vst.msk [vmem:[#allocation2] sm:$0x3] %vm36, 0.0
      %38 = vst.msk [vmem:[#allocation3] sm:$0x3] %vm36, 0.0
    $region25: #{tpu_custom_call.1} parent=1 // pred_fallthru
      _
    %v39 = vld [vmem:[%s0] sm:$0x3]
    %v40 = vld [vmem:[%s0 + $0x2] sm:$0x3]
    %v41 = vld [vmem:[%s0 + $0x4] sm:$0x3]
    %v42 = vld [vmem:[%s0 + $0x6] sm:$0x3]
    %v43 = vld [vmem:[%s0 + $0x8] sm:$0x3]
    %v44 = vld [vmem:[%s0 + $0xa] sm:$0x3]
    %v45 = vld [vmem:[%s0 + $0xc] sm:$0x3]
    %v46 = vld [vmem:[%s0 + $0xe] sm:$0x3]
    %v47 = vld [vmem:[%s1] sm:$0x1]
    %v48 = vld [vmem:[%s2] sm:$0x1]
    %50 = vset.pattern.permute.xlu0 0
    %51 = vperm.xlu0 %50, %v39
    %v52 = vpop.permute.xlu0 %51
    %55 = vset.pattern.permute.xlu0 0
    %56 = vperm.xlu0 %55, %v40
    %v57 = vpop.permute.xlu0 %56
    %60 = vset.pattern.permute.xlu0 0
    %61 = vperm.xlu0 %60, %v41
    %v62 = vpop.permute.xlu0 %61
    %65 = vset.pattern.permute.xlu0 0
    %66 = vperm.xlu0 %65, %v42
    %v67 = vpop.permute.xlu0 %66
    %70 = vset.pattern.permute.xlu0 0
    %71 = vperm.xlu0 %70, %v43
    %v72 = vpop.permute.xlu0 %71
    %75 = vset.pattern.permute.xlu0 0
    %76 = vperm.xlu0 %75, %v44
    %v77 = vpop.permute.xlu0 %76
    %80 = vset.pattern.permute.xlu0 0
    %81 = vperm.xlu0 %80, %v45
    %v82 = vpop.permute.xlu0 %81
    %85 = vset.pattern.permute.xlu0 0
    %86 = vperm.xlu0 %85, %v46
    %v87 = vpop.permute.xlu0 %86
    %v90 = vlaneseq
    %v91 = vshrl.u32 %v90, 7
    %v92 = vsub.s32 0, %v91
    %v93 = vrot.slane %v47, %v92
    %v95 = vmul.f32 %v52, %v93
    %v96 = vmul.f32 %v57, %v93
    %v97 = vmul.f32 %v62, %v93
    %v98 = vmul.f32 %v67, %v93
    %v99 = vmul.f32 %v72, %v93
    %v100 = vmul.f32 %v77, %v93
    %v101 = vmul.f32 %v82, %v93
    %v102 = vmul.f32 %v87, %v93
    %v104 = vlaneseq
    %v105 = vshrl.u32 %v104, 7
    %v106 = vsub.s32 0, %v105
    %v107 = vrot.slane %v48, %v106
    %v109 = vadd.f32 %v95, %v107
    %v110 = vadd.f32 %v96, %v107
    %v111 = vadd.f32 %v97, %v107
    %v112 = vadd.f32 %v98, %v107
    %v113 = vadd.f32 %v99, %v107
    %v114 = vadd.f32 %v100, %v107
    %v115 = vadd.f32 %v101, %v107
    %v116 = vadd.f32 %v102, %v107
    %v117 = vld [vmem:[#allocation4] sm:$0xff]
    %v118 = vld [vmem:[#allocation4 + $0x8] sm:$0xff]
    %v119 = vld [vmem:[#allocation4 + $0x10] sm:$0xff]
    %v120 = vld [vmem:[#allocation4 + $0x18] sm:$0xff]
    %v121 = vld [vmem:[#allocation2] sm:$0x3]
    %v122 = vld [vmem:[#allocation3] sm:$0x3]
    %vm123 = vcmask 261120
    %v125 = vsel %vm123, %v121, 0
    %127 = vmatprep.subr.mxu0 0.0
    %128 = vmatpush1.msra.mxu0 %v117
    %129 = vmatprep.subr.mxu0 0.0
    %130 = vmatpush1.msra.mxu0 %v118
    %131 = vmatprep.subr.mxu0 0.0
    %132 = vmatpush1.msra.mxu0 %v119
    %133 = vmatprep.subr.mxu0 0.0
    %134 = vmatpush1.msra.mxu0 %v120
    %135 = vmatprep.subr.mxu0 0.0
    %136 = vmatpush1.msra.mxu0 0.0
    %137 = vmatprep.subr.mxu0 0.0
    %138 = vmatpush1.msra.mxu0 0.0
    %139 = vmatprep.subr.mxu0 0.0
    %140 = vmatpush1.msra.mxu0 0.0
    %141 = vmatprep.subr.mxu0 0.0
    %142 = vmatpush1.msra.mxu0 0.0
    %143 = vmatprep.subr.mxu0 0.0
    %144 = vmatpush1.msra.mxu0 0.0
    %145 = vmatprep.subr.mxu0 0.0
    %146 = vmatpush1.msra.mxu0 0.0
    %147 = vmatprep.subr.mxu0 0.0
    %148 = vmatpush1.msra.mxu0 0.0
    %149 = vmatprep.subr.mxu0 0.0
    %150 = vmatpush1.msra.mxu0 0.0
    %151 = vmatprep.subr.mxu0 0.0
    %152 = vmatpush1.msra.mxu0 0.0
    %153 = vmatprep.subr.mxu0 0.0
    %154 = vmatpush1.msra.mxu0 0.0
    %155 = vmatprep.subr.mxu0 0.0
    %156 = vmatpush1.msra.mxu0 0.0
    %157 = vmatprep.subr.mxu0 0.0
    %158 = vmatpush1.msra.mxu0 0.0
    %159 = vmatprep.subr.mxu0 0.0
    %160 = vmatpush1.msra.mxu0 0.0
    %161 = vmatprep.subr.mxu0 0.0
    %162 = vmatpush1.msra.mxu0 0.0
    %163 = vmatprep.subr.mxu0 0.0
    %164 = vmatpush1.msra.mxu0 0.0
    %165 = vmatprep.subr.mxu0 0.0
    %166 = vmatpush1.msra.mxu0 0.0
    %167 = vmatprep.subr.mxu0 0.0
    %168 = vmatpush1.msra.mxu0 0.0
    %169 = vmatprep.subr.mxu0 0.0
    %170 = vmatpush1.msra.mxu0 0.0
    %171 = vmatprep.subr.mxu0 0.0
    %172 = vmatpush1.msra.mxu0 0.0
    %173 = vmatprep.subr.mxu0 0.0
    %174 = vmatpush1.msra.mxu0 0.0
    %175 = vmatprep.subr.mxu0 0.0
    %176 = vmatpush1.msra.mxu0 0.0
    %177 = vmatprep.subr.mxu0 0.0
    %178 = vmatpush1.msra.mxu0 0.0
    %179 = vmatprep.subr.mxu0 0.0
    %180 = vmatpush1.msra.mxu0 0.0
    %181 = vmatprep.subr.mxu0 0.0
    %182 = vmatpush1.msra.mxu0 0.0
    %183 = vmatprep.subr.mxu0 0.0
    %184 = vmatpush1.msra.mxu0 0.0
    %185 = vmatprep.subr.mxu0 0.0
    %186 = vmatpush1.msra.mxu0 0.0
    %187 = vmatprep.subr.mxu0 0.0
    %188 = vmatpush1.msra.mxu0 0.0
    %189 = vmatprep.subr.mxu0 0.0
    %190 = vmatpush1.msra.mxu0 0.0
    %191 = vmatprep.mubr.f32.mxu0 0.0
    %192 = vmatmul.mubr.f32.gmra.mrb[0].mxu0 %v125
    %v193 = vpop.f32.mrb[0].mxu0
    %v194 = vadd.f32 0.0, %v193
    %v195 = vpop.f32.mrb[0].mxu0
    %196 = vdwg.mxu0
    %v197 = vadd.f32 %v109, %v194
    %v198 = vxor.u32 %v197, 2147483648
    %v199 = vmul.f32 %v198, 1.442695
    %v200 = vpow.pop %v199
    %v201 = vadd.f32 %v200, 1.0
    %v202 = vrcp.pop %v201
    %v203 = vmul.f32 1.0, %v202
    %v204 = vtanh.pop %v197
    %206 = vrot.lane.b32.xlu0 %v122, 32
    %v207 = vpop.permute.xlu0 %206
    %v209 = vmul.f32 %v203, %v207
    %211 = vrot.lane.b32.xlu0 %v204, 64
    %v212 = vpop.permute.xlu0 %211
    %v214 = vmul.f32 %v203, %v212
    %216 = vrot.lane.b32.xlu0 %v214, 32
    %v217 = vpop.permute.xlu0 %216
    %v219 = vadd.f32 %v209, %v217
    %v220 = vtanh.pop %v219
    %222 = vrot.lane.b32.xlu0 %v220, 64
    %v223 = vpop.permute.xlu0 %222
    %v225 = vmul.f32 %v203, %v223
    %227 = vrot.lane.b32.xlu0 %v225, 32
    %v228 = vpop.permute.xlu0 %227
    %v229 = vsel %vm123, %v228, 0
    %231 = vmatprep.subr.mxu0 0.0
    %232 = vmatpush1.msra.mxu0 %v117
    %233 = vmatprep.subr.mxu0 0.0
    %234 = vmatpush1.msra.mxu0 %v118
    %235 = vmatprep.subr.mxu0 0.0
    %236 = vmatpush1.msra.mxu0 %v119
    %237 = vmatprep.subr.mxu0 0.0
    %238 = vmatpush1.msra.mxu0 %v120
    %239 = vmatprep.subr.mxu0 0.0
    %240 = vmatpush1.msra.mxu0 0.0
    %241 = vmatprep.subr.mxu0 0.0
    %242 = vmatpush1.msra.mxu0 0.0
    %243 = vmatprep.subr.mxu0 0.0
    %244 = vmatpush1.msra.mxu0 0.0
    %245 = vmatprep.subr.mxu0 0.0
    %246 = vmatpush1.msra.mxu0 0.0
    %247 = vmatprep.subr.mxu0 0.0
    %248 = vmatpush1.msra.mxu0 0.0
    %249 = vmatprep.subr.mxu0 0.0
    %250 = vmatpush1.msra.mxu0 0.0
    %251 = vmatprep.subr.mxu0 0.0
    %252 = vmatpush1.msra.mxu0 0.0
    %253 = vmatprep.subr.mxu0 0.0
    %254 = vmatpush1.msra.mxu0 0.0
    %255 = vmatprep.subr.mxu0 0.0
    %256 = vmatpush1.msra.mxu0 0.0
    %257 = vmatprep.subr.mxu0 0.0
    %258 = vmatpush1.msra.mxu0 0.0
    %259 = vmatprep.subr.mxu0 0.0
    %260 = vmatpush1.msra.mxu0 0.0
    %261 = vmatprep.subr.mxu0 0.0
    %262 = vmatpush1.msra.mxu0 0.0
    %263 = vmatprep.subr.mxu0 0.0
    %264 = vmatpush1.msra.mxu0 0.0
    %265 = vmatprep.subr.mxu0 0.0
    %266 = vmatpush1.msra.mxu0 0.0
    %267 = vmatprep.subr.mxu0 0.0
    %268 = vmatpush1.msra.mxu0 0.0
    %269 = vmatprep.subr.mxu0 0.0
    %270 = vmatpush1.msra.mxu0 0.0
    %271 = vmatprep.subr.mxu0 0.0
    %272 = vmatpush1.msra.mxu0 0.0
    %273 = vmatprep.subr.mxu0 0.0
    %274 = vmatpush1.msra.mxu0 0.0
    %275 = vmatprep.subr.mxu0 0.0
    %276 = vmatpush1.msra.mxu0 0.0
    %277 = vmatprep.subr.mxu0 0.0
    %278 = vmatpush1.msra.mxu0 0.0
    %279 = vmatprep.subr.mxu0 0.0
    %280 = vmatpush1.msra.mxu0 0.0
    %281 = vmatprep.subr.mxu0 0.0
    %282 = vmatpush1.msra.mxu0 0.0
    %283 = vmatprep.subr.mxu0 0.0
    %284 = vmatpush1.msra.mxu0 0.0
    %285 = vmatprep.subr.mxu0 0.0
    %286 = vmatpush1.msra.mxu0 0.0
    %287 = vmatprep.subr.mxu0 0.0
    %288 = vmatpush1.msra.mxu0 0.0
    %289 = vmatprep.subr.mxu0 0.0
    %290 = vmatpush1.msra.mxu0 0.0
    %291 = vmatprep.subr.mxu0 0.0
    %292 = vmatpush1.msra.mxu0 0.0
    %293 = vmatprep.subr.mxu0 0.0
    %294 = vmatpush1.msra.mxu0 0.0
    %295 = vmatprep.mubr.f32.mxu0 0.0
    %296 = vmatmul.mubr.f32.gmra.mrb[0].mxu0 %v229
    %v297 = vpop.f32.mrb[0].mxu0
    %v298 = vadd.f32 0.0, %v297
    %v299 = vpop.f32.mrb[0].mxu0
    %300 = vdwg.mxu0
    %v301 = vadd.f32 %v110, %v298
    %v302 = vxor.u32 %v301, 2147483648
    %v303 = vmul.f32 %v302, 1.442695
    %v304 = vpow.pop %v303
    %v305 = vadd.f32 %v304, 1.0
    %v306 = vrcp.pop %v305
    %v307 = vmul.f32 1.0, %v306
    %v308 = vtanh.pop %v301
    %v309 = vmul.f32 %v307, %v219
    %311 = vrot.lane.b32.xlu0 %v308, 64
    %v312 = vpop.permute.xlu0 %311
    %v314 = vmul.f32 %v307, %v312
    %316 = vrot.lane.b32.xlu0 %v314, 32
    %v317 = vpop.permute.xlu0 %316
    %v319 = vadd.f32 %v309, %v317
    %v320 = vtanh.pop %v319
    %322 = vrot.lane.b32.xlu0 %v320, 64
    %v323 = vpop.permute.xlu0 %322
    %v325 = vmul.f32 %v307, %v323
    %327 = vrot.lane.b32.xlu0 %v325, 32
    %v328 = vpop.permute.xlu0 %327
    %v329 = vsel %vm123, %v328, 0
    %331 = vmatprep.subr.mxu0 0.0
    %332 = vmatpush1.msra.mxu0 %v117
    %333 = vmatprep.subr.mxu0 0.0
    %334 = vmatpush1.msra.mxu0 %v118
    %335 = vmatprep.subr.mxu0 0.0
    %336 = vmatpush1.msra.mxu0 %v119
    %337 = vmatprep.subr.mxu0 0.0
    %338 = vmatpush1.msra.mxu0 %v120
    %339 = vmatprep.subr.mxu0 0.0
    %340 = vmatpush1.msra.mxu0 0.0
    %341 = vmatprep.subr.mxu0 0.0
    %342 = vmatpush1.msra.mxu0 0.0
    %343 = vmatprep.subr.mxu0 0.0
    %344 = vmatpush1.msra.mxu0 0.0
    %345 = vmatprep.subr.mxu0 0.0
    %346 = vmatpush1.msra.mxu0 0.0
    %347 = vmatprep.subr.mxu0 0.0
    %348 = vmatpush1.msra.mxu0 0.0
    %349 = vmatprep.subr.mxu0 0.0
    %350 = vmatpush1.msra.mxu0 0.0
    %351 = vmatprep.subr.mxu0 0.0
    %352 = vmatpush1.msra.mxu0 0.0
    %353 = vmatprep.subr.mxu0 0.0
    %354 = vmatpush1.msra.mxu0 0.0
    %355 = vmatprep.subr.mxu0 0.0
    %356 = vmatpush1.msra.mxu0 0.0
    %357 = vmatprep.subr.mxu0 0.0
    %358 = vmatpush1.msra.mxu0 0.0
    %359 = vmatprep.subr.mxu0 0.0
    %360 = vmatpush1.msra.mxu0 0.0
    %361 = vmatprep.subr.mxu0 0.0
    %362 = vmatpush1.msra.mxu0 0.0
    %363 = vmatprep.subr.mxu0 0.0
    %364 = vmatpush1.msra.mxu0 0.0
    %365 = vmatprep.subr.mxu0 0.0
    %366 = vmatpush1.msra.mxu0 0.0
    %367 = vmatprep.subr.mxu0 0.0
    %368 = vmatpush1.msra.mxu0 0.0
    %369 = vmatprep.subr.mxu0 0.0
    %370 = vmatpush1.msra.mxu0 0.0
    %371 = vmatprep.subr.mxu0 0.0
    %372 = vmatpush1.msra.mxu0 0.0
    %373 = vmatprep.subr.mxu0 0.0
    %374 = vmatpush1.msra.mxu0 0.0
    %375 = vmatprep.subr.mxu0 0.0
    %376 = vmatpush1.msra.mxu0 0.0
    %377 = vmatprep.subr.mxu0 0.0
    %378 = vmatpush1.msra.mxu0 0.0
    %379 = vmatprep.subr.mxu0 0.0
    %380 = vmatpush1.msra.mxu0 0.0
    %381 = vmatprep.subr.mxu0 0.0
    %382 = vmatpush1.msra.mxu0 0.0
    %383 = vmatprep.subr.mxu0 0.0
    %384 = vmatpush1.msra.mxu0 0.0
    %385 = vmatprep.subr.mxu0 0.0
    %386 = vmatpush1.msra.mxu0 0.0
    %387 = vmatprep.subr.mxu0 0.0
    %388 = vmatpush1.msra.mxu0 0.0
    %389 = vmatprep.subr.mxu0 0.0
    %390 = vmatpush1.msra.mxu0 0.0
    %391 = vmatprep.subr.mxu0 0.0
    %392 = vmatpush1.msra.mxu0 0.0
    %393 = vmatprep.subr.mxu0 0.0
    %394 = vmatpush1.msra.mxu0 0.0
    %395 = vmatprep.mubr.f32.mxu0 0.0
    %396 = vmatmul.mubr.f32.gmra.mrb[0].mxu0 %v329
    %v397 = vpop.f32.mrb[0].mxu0
    %v398 = vadd.f32 0.0, %v397
    %v399 = vpop.f32.mrb[0].mxu0
    %400 = vdwg.mxu0
    %v401 = vadd.f32 %v111, %v398
    %v402 = vxor.u32 %v401, 2147483648
    %v403 = vmul.f32 %v402, 1.442695
    %v404 = vpow.pop %v403
    %v405 = vadd.f32 %v404, 1.0
    %v406 = vrcp.pop %v405
    %v407 = vmul.f32 1.0, %v406
    %v408 = vtanh.pop %v401
    %v409 = vmul.f32 %v407, %v319
    %411 = vrot.lane.b32.xlu0 %v408, 64
    %v412 = vpop.permute.xlu0 %411
    %v414 = vmul.f32 %v407, %v412
    %416 = vrot.lane.b32.xlu0 %v414, 32
    %v417 = vpop.permute.xlu0 %416
    %v419 = vadd.f32 %v409, %v417
    %v420 = vtanh.pop %v419
    %422 = vrot.lane.b32.xlu0 %v420, 64
    %v423 = vpop.permute.xlu0 %422
    %v425 = vmul.f32 %v407, %v423
    %427 = vrot.lane.b32.xlu0 %v425, 32
    %v428 = vpop.permute.xlu0 %427
    %v429 = vsel %vm123, %v428, 0
    %431 = vmatprep.subr.mxu0 0.0
    %432 = vmatpush1.msra.mxu0 %v117
    %433 = vmatprep.subr.mxu0 0.0
    %434 = vmatpush1.msra.mxu0 %v118
    %435 = vmatprep.subr.mxu0 0.0
    %436 = vmatpush1.msra.mxu0 %v119
    %437 = vmatprep.subr.mxu0 0.0
    %438 = vmatpush1.msra.mxu0 %v120
    %439 = vmatprep.subr.mxu0 0.0
    %440 = vmatpush1.msra.mxu0 0.0
    %441 = vmatprep.subr.mxu0 0.0
    %442 = vmatpush1.msra.mxu0 0.0
    %443 = vmatprep.subr.mxu0 0.0
    %444 = vmatpush1.msra.mxu0 0.0
    %445 = vmatprep.subr.mxu0 0.0
    %446 = vmatpush1.msra.mxu0 0.0
    %447 = vmatprep.subr.mxu0 0.0
    %448 = vmatpush1.msra.mxu0 0.0
    %449 = vmatprep.subr.mxu0 0.0
    %450 = vmatpush1.msra.mxu0 0.0
    %451 = vmatprep.subr.mxu0 0.0
    %452 = vmatpush1.msra.mxu0 0.0
    %453 = vmatprep.subr.mxu0 0.0
    %454 = vmatpush1.msra.mxu0 0.0
    %455 = vmatprep.subr.mxu0 0.0
    %456 = vmatpush1.msra.mxu0 0.0
    %457 = vmatprep.subr.mxu0 0.0
    %458 = vmatpush1.msra.mxu0 0.0
    %459 = vmatprep.subr.mxu0 0.0
    %460 = vmatpush1.msra.mxu0 0.0
    %461 = vmatprep.subr.mxu0 0.0
    %462 = vmatpush1.msra.mxu0 0.0
    %463 = vmatprep.subr.mxu0 0.0
    %464 = vmatpush1.msra.mxu0 0.0
    %465 = vmatprep.subr.mxu0 0.0
    %466 = vmatpush1.msra.mxu0 0.0
    %467 = vmatprep.subr.mxu0 0.0
    %468 = vmatpush1.msra.mxu0 0.0
    %469 = vmatprep.subr.mxu0 0.0
    %470 = vmatpush1.msra.mxu0 0.0
    %471 = vmatprep.subr.mxu0 0.0
    %472 = vmatpush1.msra.mxu0 0.0
    %473 = vmatprep.subr.mxu0 0.0
    %474 = vmatpush1.msra.mxu0 0.0
    %475 = vmatprep.subr.mxu0 0.0
    %476 = vmatpush1.msra.mxu0 0.0
    %477 = vmatprep.subr.mxu0 0.0
    %478 = vmatpush1.msra.mxu0 0.0
    %479 = vmatprep.subr.mxu0 0.0
    %480 = vmatpush1.msra.mxu0 0.0
    %481 = vmatprep.subr.mxu0 0.0
    %482 = vmatpush1.msra.mxu0 0.0
    %483 = vmatprep.subr.mxu0 0.0
    %484 = vmatpush1.msra.mxu0 0.0
    %485 = vmatprep.subr.mxu0 0.0
    %486 = vmatpush1.msra.mxu0 0.0
    %487 = vmatprep.subr.mxu0 0.0
    %488 = vmatpush1.msra.mxu0 0.0
    %489 = vmatprep.subr.mxu0 0.0
    %490 = vmatpush1.msra.mxu0 0.0
    %491 = vmatprep.subr.mxu0 0.0
    %492 = vmatpush1.msra.mxu0 0.0
    %493 = vmatprep.subr.mxu0 0.0
    %494 = vmatpush1.msra.mxu0 0.0
    %495 = vmatprep.mubr.f32.mxu0 0.0
    %496 = vmatmul.mubr.f32.gmra.mrb[0].mxu0 %v429
    %v497 = vpop.f32.mrb[0].mxu0
    %v498 = vadd.f32 0.0, %v497
    %v499 = vpop.f32.mrb[0].mxu0
    %500 = vdwg.mxu0
    %v501 = vadd.f32 %v112, %v498
    %v502 = vxor.u32 %v501, 2147483648
    %v503 = vmul.f32 %v502, 1.442695
    %v504 = vpow.pop %v503
    %v505 = vadd.f32 %v504, 1.0
    %v506 = vrcp.pop %v505
    %v507 = vmul.f32 1.0, %v506
    %v508 = vtanh.pop %v501
    %v509 = vmul.f32 %v507, %v419
    %511 = vrot.lane.b32.xlu0 %v508, 64
    %v512 = vpop.permute.xlu0 %511
    %v514 = vmul.f32 %v507, %v512
    %516 = vrot.lane.b32.xlu0 %v514, 32
    %v517 = vpop.permute.xlu0 %516
    %v519 = vadd.f32 %v509, %v517
    %v520 = vtanh.pop %v519
    %522 = vrot.lane.b32.xlu0 %v520, 64
    %v523 = vpop.permute.xlu0 %522
    %v525 = vmul.f32 %v507, %v523
    %527 = vrot.lane.b32.xlu0 %v525, 32
    %v528 = vpop.permute.xlu0 %527
    %v529 = vsel %vm123, %v528, 0
    %531 = vmatprep.subr.mxu0 0.0
    %532 = vmatpush1.msra.mxu0 %v117
    %533 = vmatprep.subr.mxu0 0.0
    %534 = vmatpush1.msra.mxu0 %v118
    %535 = vmatprep.subr.mxu0 0.0
    %536 = vmatpush1.msra.mxu0 %v119
    %537 = vmatprep.subr.mxu0 0.0
    %538 = vmatpush1.msra.mxu0 %v120
    %539 = vmatprep.subr.mxu0 0.0
    %540 = vmatpush1.msra.mxu0 0.0
    %541 = vmatprep.subr.mxu0 0.0
    %542 = vmatpush1.msra.mxu0 0.0
    %543 = vmatprep.subr.mxu0 0.0
    %544 = vmatpush1.msra.mxu0 0.0
    %545 = vmatprep.subr.mxu0 0.0
    %546 = vmatpush1.msra.mxu0 0.0
    %547 = vmatprep.subr.mxu0 0.0
    %548 = vmatpush1.msra.mxu0 0.0
    %549 = vmatprep.subr.mxu0 0.0
    %550 = vmatpush1.msra.mxu0 0.0
    %551 = vmatprep.subr.mxu0 0.0
    %552 = vmatpush1.msra.mxu0 0.0
    %553 = vmatprep.subr.mxu0 0.0
    %554 = vmatpush1.msra.mxu0 0.0
    %555 = vmatprep.subr.mxu0 0.0
    %556 = vmatpush1.msra.mxu0 0.0
    %557 = vmatprep.subr.mxu0 0.0
    %558 = vmatpush1.msra.mxu0 0.0
    %559 = vmatprep.subr.mxu0 0.0
    %560 = vmatpush1.msra.mxu0 0.0
    %561 = vmatprep.subr.mxu0 0.0
    %562 = vmatpush1.msra.mxu0 0.0
    %563 = vmatprep.subr.mxu0 0.0
    %564 = vmatpush1.msra.mxu0 0.0
    %565 = vmatprep.subr.mxu0 0.0
    %566 = vmatpush1.msra.mxu0 0.0
    %567 = vmatprep.subr.mxu0 0.0
    %568 = vmatpush1.msra.mxu0 0.0
    %569 = vmatprep.subr.mxu0 0.0
    %570 = vmatpush1.msra.mxu0 0.0
    %571 = vmatprep.subr.mxu0 0.0
    %572 = vmatpush1.msra.mxu0 0.0
    %573 = vmatprep.subr.mxu0 0.0
    %574 = vmatpush1.msra.mxu0 0.0
    %575 = vmatprep.subr.mxu0 0.0
    %576 = vmatpush1.msra.mxu0 0.0
    %577 = vmatprep.subr.mxu0 0.0
    %578 = vmatpush1.msra.mxu0 0.0
    %579 = vmatprep.subr.mxu0 0.0
    %580 = vmatpush1.msra.mxu0 0.0
    %581 = vmatprep.subr.mxu0 0.0
    %582 = vmatpush1.msra.mxu0 0.0
    %583 = vmatprep.subr.mxu0 0.0
    %584 = vmatpush1.msra.mxu0 0.0
    %585 = vmatprep.subr.mxu0 0.0
    %586 = vmatpush1.msra.mxu0 0.0
    %587 = vmatprep.subr.mxu0 0.0
    %588 = vmatpush1.msra.mxu0 0.0
    %589 = vmatprep.subr.mxu0 0.0
    %590 = vmatpush1.msra.mxu0 0.0
    %591 = vmatprep.subr.mxu0 0.0
    %592 = vmatpush1.msra.mxu0 0.0
    %593 = vmatprep.subr.mxu0 0.0
    %594 = vmatpush1.msra.mxu0 0.0
    %595 = vmatprep.mubr.f32.mxu0 0.0
    %596 = vmatmul.mubr.f32.gmra.mrb[0].mxu0 %v529
    %v597 = vpop.f32.mrb[0].mxu0
    %v598 = vadd.f32 0.0, %v597
    %v599 = vpop.f32.mrb[0].mxu0
    %600 = vdwg.mxu0
    %v601 = vadd.f32 %v113, %v598
    %v602 = vxor.u32 %v601, 2147483648
    %v603 = vmul.f32 %v602, 1.442695
    %v604 = vpow.pop %v603
    %v605 = vadd.f32 %v604, 1.0
    %v606 = vrcp.pop %v605
    %v607 = vmul.f32 1.0, %v606
    %v608 = vtanh.pop %v601
    %v609 = vmul.f32 %v607, %v519
    %611 = vrot.lane.b32.xlu0 %v608, 64
    %v612 = vpop.permute.xlu0 %611
    %v614 = vmul.f32 %v607, %v612
    %616 = vrot.lane.b32.xlu0 %v614, 32
    %v617 = vpop.permute.xlu0 %616
    %v619 = vadd.f32 %v609, %v617
    %v620 = vtanh.pop %v619
    %622 = vrot.lane.b32.xlu0 %v620, 64
    %v623 = vpop.permute.xlu0 %622
    %v625 = vmul.f32 %v607, %v623
    %627 = vrot.lane.b32.xlu0 %v625, 32
    %v628 = vpop.permute.xlu0 %627
    %v629 = vsel %vm123, %v628, 0
    %631 = vmatprep.subr.mxu0 0.0
    %632 = vmatpush1.msra.mxu0 %v117
    %633 = vmatprep.subr.mxu0 0.0
    %634 = vmatpush1.msra.mxu0 %v118
    %635 = vmatprep.subr.mxu0 0.0
    %636 = vmatpush1.msra.mxu0 %v119
    %637 = vmatprep.subr.mxu0 0.0
    %638 = vmatpush1.msra.mxu0 %v120
    %639 = vmatprep.subr.mxu0 0.0
    %640 = vmatpush1.msra.mxu0 0.0
    %641 = vmatprep.subr.mxu0 0.0
    %642 = vmatpush1.msra.mxu0 0.0
    %643 = vmatprep.subr.mxu0 0.0
    %644 = vmatpush1.msra.mxu0 0.0
    %645 = vmatprep.subr.mxu0 0.0
    %646 = vmatpush1.msra.mxu0 0.0
    %647 = vmatprep.subr.mxu0 0.0
    %648 = vmatpush1.msra.mxu0 0.0
    %649 = vmatprep.subr.mxu0 0.0
    %650 = vmatpush1.msra.mxu0 0.0
    %651 = vmatprep.subr.mxu0 0.0
    %652 = vmatpush1.msra.mxu0 0.0
    %653 = vmatprep.subr.mxu0 0.0
    %654 = vmatpush1.msra.mxu0 0.0
    %655 = vmatprep.subr.mxu0 0.0
    %656 = vmatpush1.msra.mxu0 0.0
    %657 = vmatprep.subr.mxu0 0.0
    %658 = vmatpush1.msra.mxu0 0.0
    %659 = vmatprep.subr.mxu0 0.0
    %660 = vmatpush1.msra.mxu0 0.0
    %661 = vmatprep.subr.mxu0 0.0
    %662 = vmatpush1.msra.mxu0 0.0
    %663 = vmatprep.subr.mxu0 0.0
    %664 = vmatpush1.msra.mxu0 0.0
    %665 = vmatprep.subr.mxu0 0.0
    %666 = vmatpush1.msra.mxu0 0.0
    %667 = vmatprep.subr.mxu0 0.0
    %668 = vmatpush1.msra.mxu0 0.0
    %669 = vmatprep.subr.mxu0 0.0
    %670 = vmatpush1.msra.mxu0 0.0
    %671 = vmatprep.subr.mxu0 0.0
    %672 = vmatpush1.msra.mxu0 0.0
    %673 = vmatprep.subr.mxu0 0.0
    %674 = vmatpush1.msra.mxu0 0.0
    %675 = vmatprep.subr.mxu0 0.0
    %676 = vmatpush1.msra.mxu0 0.0
    %677 = vmatprep.subr.mxu0 0.0
    %678 = vmatpush1.msra.mxu0 0.0
    %679 = vmatprep.subr.mxu0 0.0
    %680 = vmatpush1.msra.mxu0 0.0
    %681 = vmatprep.subr.mxu0 0.0
    %682 = vmatpush1.msra.mxu0 0.0
    %683 = vmatprep.subr.mxu0 0.0
    %684 = vmatpush1.msra.mxu0 0.0
    %685 = vmatprep.subr.mxu0 0.0
    %686 = vmatpush1.msra.mxu0 0.0
    %687 = vmatprep.subr.mxu0 0.0
    %688 = vmatpush1.msra.mxu0 0.0
    %689 = vmatprep.subr.mxu0 0.0
    %690 = vmatpush1.msra.mxu0 0.0
    %691 = vmatprep.subr.mxu0 0.0
    %692 = vmatpush1.msra.mxu0 0.0
    %693 = vmatprep.subr.mxu0 0.0
    %694 = vmatpush1.msra.mxu0 0.0
    %695 = vmatprep.mubr.f32.mxu0 0.0
    %696 = vmatmul.mubr.f32.gmra.mrb[0].mxu0 %v629
    %v697 = vpop.f32.mrb[0].mxu0
    %v698 = vadd.f32 0.0, %v697
    %v699 = vpop.f32.mrb[0].mxu0
    %700 = vdwg.mxu0
    %v701 = vadd.f32 %v114, %v698
    %v702 = vxor.u32 %v701, 2147483648
    %v703 = vmul.f32 %v702, 1.442695
    %v704 = vpow.pop %v703
    %v705 = vadd.f32 %v704, 1.0
    %v706 = vrcp.pop %v705
    %v707 = vmul.f32 1.0, %v706
    %v708 = vtanh.pop %v701
    %v709 = vmul.f32 %v707, %v619
    %711 = vrot.lane.b32.xlu0 %v708, 64
    %v712 = vpop.permute.xlu0 %711
    %v714 = vmul.f32 %v707, %v712
    %716 = vrot.lane.b32.xlu0 %v714, 32
    %v717 = vpop.permute.xlu0 %716
    %v719 = vadd.f32 %v709, %v717
    %v720 = vtanh.pop %v719
    %722 = vrot.lane.b32.xlu0 %v720, 64
    %v723 = vpop.permute.xlu0 %722
    %v725 = vmul.f32 %v707, %v723
    %727 = vrot.lane.b32.xlu0 %v725, 32
    %v728 = vpop.permute.xlu0 %727
    %v729 = vsel %vm123, %v728, 0
    %731 = vmatprep.subr.mxu0 0.0
    %732 = vmatpush1.msra.mxu0 %v117
    %733 = vmatprep.subr.mxu0 0.0
    %734 = vmatpush1.msra.mxu0 %v118
    %735 = vmatprep.subr.mxu0 0.0
    %736 = vmatpush1.msra.mxu0 %v119
    %737 = vmatprep.subr.mxu0 0.0
    %738 = vmatpush1.msra.mxu0 %v120
    %739 = vmatprep.subr.mxu0 0.0
    %740 = vmatpush1.msra.mxu0 0.0
    %741 = vmatprep.subr.mxu0 0.0
    %742 = vmatpush1.msra.mxu0 0.0
    %743 = vmatprep.subr.mxu0 0.0
    %744 = vmatpush1.msra.mxu0 0.0
    %745 = vmatprep.subr.mxu0 0.0
    %746 = vmatpush1.msra.mxu0 0.0
    %747 = vmatprep.subr.mxu0 0.0
    %748 = vmatpush1.msra.mxu0 0.0
    %749 = vmatprep.subr.mxu0 0.0
    %750 = vmatpush1.msra.mxu0 0.0
    %751 = vmatprep.subr.mxu0 0.0
    %752 = vmatpush1.msra.mxu0 0.0
    %753 = vmatprep.subr.mxu0 0.0
    %754 = vmatpush1.msra.mxu0 0.0
    %755 = vmatprep.subr.mxu0 0.0
    %756 = vmatpush1.msra.mxu0 0.0
    %757 = vmatprep.subr.mxu0 0.0
    %758 = vmatpush1.msra.mxu0 0.0
    %759 = vmatprep.subr.mxu0 0.0
    %760 = vmatpush1.msra.mxu0 0.0
    %761 = vmatprep.subr.mxu0 0.0
    %762 = vmatpush1.msra.mxu0 0.0
    %763 = vmatprep.subr.mxu0 0.0
    %764 = vmatpush1.msra.mxu0 0.0
    %765 = vmatprep.subr.mxu0 0.0
    %766 = vmatpush1.msra.mxu0 0.0
    %767 = vmatprep.subr.mxu0 0.0
    %768 = vmatpush1.msra.mxu0 0.0
    %769 = vmatprep.subr.mxu0 0.0
    %770 = vmatpush1.msra.mxu0 0.0
    %771 = vmatprep.subr.mxu0 0.0
    %772 = vmatpush1.msra.mxu0 0.0
    %773 = vmatprep.subr.mxu0 0.0
    %774 = vmatpush1.msra.mxu0 0.0
    %775 = vmatprep.subr.mxu0 0.0
    %776 = vmatpush1.msra.mxu0 0.0
    %777 = vmatprep.subr.mxu0 0.0
    %778 = vmatpush1.msra.mxu0 0.0
    %779 = vmatprep.subr.mxu0 0.0
    %780 = vmatpush1.msra.mxu0 0.0
    %781 = vmatprep.subr.mxu0 0.0
    %782 = vmatpush1.msra.mxu0 0.0
    %783 = vmatprep.subr.mxu0 0.0
    %784 = vmatpush1.msra.mxu0 0.0
    %785 = vmatprep.subr.mxu0 0.0
    %786 = vmatpush1.msra.mxu0 0.0
    %787 = vmatprep.subr.mxu0 0.0
    %788 = vmatpush1.msra.mxu0 0.0
    %789 = vmatprep.subr.mxu0 0.0
    %790 = vmatpush1.msra.mxu0 0.0
    %791 = vmatprep.subr.mxu0 0.0
    %792 = vmatpush1.msra.mxu0 0.0
    %793 = vmatprep.subr.mxu0 0.0
    %794 = vmatpush1.msra.mxu0 0.0
    %795 = vmatprep.mubr.f32.mxu0 0.0
    %796 = vmatmul.mubr.f32.gmra.mrb[0].mxu0 %v729
    %v797 = vpop.f32.mrb[0].mxu0
    %v798 = vadd.f32 0.0, %v797
    %v799 = vpop.f32.mrb[0].mxu0
    %800 = vdwg.mxu0
    %v801 = vadd.f32 %v115, %v798
    %v802 = vxor.u32 %v801, 2147483648
    %v803 = vmul.f32 %v802, 1.442695
    %v804 = vpow.pop %v803
    %v805 = vadd.f32 %v804, 1.0
    %v806 = vrcp.pop %v805
    %v807 = vmul.f32 1.0, %v806
    %v808 = vtanh.pop %v801
    %v809 = vmul.f32 %v807, %v719
    %811 = vrot.lane.b32.xlu0 %v808, 64
    %v812 = vpop.permute.xlu0 %811
    %v814 = vmul.f32 %v807, %v812
    %816 = vrot.lane.b32.xlu0 %v814, 32
    %v817 = vpop.permute.xlu0 %816
    %v819 = vadd.f32 %v809, %v817
    %v820 = vtanh.pop %v819
    %822 = vrot.lane.b32.xlu0 %v820, 64
    %v823 = vpop.permute.xlu0 %822
    %v825 = vmul.f32 %v807, %v823
    %827 = vrot.lane.b32.xlu0 %v825, 32
    %v828 = vpop.permute.xlu0 %827
    %v829 = vsel %vm123, %v828, 0
    %831 = vmatprep.subr.mxu0 0.0
    %832 = vmatpush1.msra.mxu0 %v117
    %833 = vmatprep.subr.mxu0 0.0
    %834 = vmatpush1.msra.mxu0 %v118
    %835 = vmatprep.subr.mxu0 0.0
    %836 = vmatpush1.msra.mxu0 %v119
    %837 = vmatprep.subr.mxu0 0.0
    %838 = vmatpush1.msra.mxu0 %v120
    %839 = vmatprep.subr.mxu0 0.0
    %840 = vmatpush1.msra.mxu0 0.0
    %841 = vmatprep.subr.mxu0 0.0
    %842 = vmatpush1.msra.mxu0 0.0
    %843 = vmatprep.subr.mxu0 0.0
    %844 = vmatpush1.msra.mxu0 0.0
    %845 = vmatprep.subr.mxu0 0.0
    %846 = vmatpush1.msra.mxu0 0.0
    %847 = vmatprep.subr.mxu0 0.0
    %848 = vmatpush1.msra.mxu0 0.0
    %849 = vmatprep.subr.mxu0 0.0
    %850 = vmatpush1.msra.mxu0 0.0
    %851 = vmatprep.subr.mxu0 0.0
    %852 = vmatpush1.msra.mxu0 0.0
    %853 = vmatprep.subr.mxu0 0.0
    %854 = vmatpush1.msra.mxu0 0.0
    %855 = vmatprep.subr.mxu0 0.0
    %856 = vmatpush1.msra.mxu0 0.0
    %857 = vmatprep.subr.mxu0 0.0
    %858 = vmatpush1.msra.mxu0 0.0
    %859 = vmatprep.subr.mxu0 0.0
    %860 = vmatpush1.msra.mxu0 0.0
    %861 = vmatprep.subr.mxu0 0.0
    %862 = vmatpush1.msra.mxu0 0.0
    %863 = vmatprep.subr.mxu0 0.0
    %864 = vmatpush1.msra.mxu0 0.0
    %865 = vmatprep.subr.mxu0 0.0
    %866 = vmatpush1.msra.mxu0 0.0
    %867 = vmatprep.subr.mxu0 0.0
    %868 = vmatpush1.msra.mxu0 0.0
    %869 = vmatprep.subr.mxu0 0.0
    %870 = vmatpush1.msra.mxu0 0.0
    %871 = vmatprep.subr.mxu0 0.0
    %872 = vmatpush1.msra.mxu0 0.0
    %873 = vmatprep.subr.mxu0 0.0
    %874 = vmatpush1.msra.mxu0 0.0
    %875 = vmatprep.subr.mxu0 0.0
    %876 = vmatpush1.msra.mxu0 0.0
    %877 = vmatprep.subr.mxu0 0.0
    %878 = vmatpush1.msra.mxu0 0.0
    %879 = vmatprep.subr.mxu0 0.0
    %880 = vmatpush1.msra.mxu0 0.0
    %881 = vmatprep.subr.mxu0 0.0
    %882 = vmatpush1.msra.mxu0 0.0
    %883 = vmatprep.subr.mxu0 0.0
    %884 = vmatpush1.msra.mxu0 0.0
    %885 = vmatprep.subr.mxu0 0.0
    %886 = vmatpush1.msra.mxu0 0.0
    %887 = vmatprep.subr.mxu0 0.0
    %888 = vmatpush1.msra.mxu0 0.0
    %889 = vmatprep.subr.mxu0 0.0
    %890 = vmatpush1.msra.mxu0 0.0
    %891 = vmatprep.subr.mxu0 0.0
    %892 = vmatpush1.msra.mxu0 0.0
    %893 = vmatprep.subr.mxu0 0.0
    %894 = vmatpush1.msra.mxu0 0.0
    %895 = vmatprep.mubr.f32.mxu0 0.0
    %896 = vmatmul.mubr.f32.gmra.mrb[0].mxu0 %v829
    %v897 = vpop.f32.mrb[0].mxu0
    %v898 = vadd.f32 0.0, %v897
    %v899 = vpop.f32.mrb[0].mxu0
    %900 = vdwg.mxu0
    %v901 = vadd.f32 %v116, %v898
    %v902 = vxor.u32 %v901, 2147483648
    %v903 = vmul.f32 %v902, 1.442695
    %v904 = vpow.pop %v903
    %v905 = vadd.f32 %v904, 1.0
    %v906 = vrcp.pop %v905
    %v907 = vmul.f32 1.0, %v906
    %v908 = vtanh.pop %v901
    %v909 = vmul.f32 %v907, %v819
    %911 = vrot.lane.b32.xlu0 %v908, 64
    %v912 = vpop.permute.xlu0 %911
    %v914 = vmul.f32 %v907, %v912
    %916 = vrot.lane.b32.xlu0 %v914, 32
    %v917 = vpop.permute.xlu0 %916
    %v919 = vadd.f32 %v909, %v917
    %v920 = vtanh.pop %v919
    %922 = vrot.lane.b32.xlu0 %v920, 64
    %v923 = vpop.permute.xlu0 %922
    %v925 = vmul.f32 %v907, %v923
    %927 = vrot.lane.b32.xlu0 %v925, 32
    %v928 = vpop.permute.xlu0 %927
    %vm930 = vcmask 254976
    %931 = vst.msk [vmem:[#allocation2] sm:$0x3] %vm930, %v928
    %933 = vrot.lane.b32.xlu0 %v919, 96
    %v934 = vpop.permute.xlu0 %933
    %936 = vst.msk [vmem:[#allocation3] sm:$0x3] %vm930, %v934
    %937 = vst.msk [vmem:[#allocation7] sm:$0x3] %vm930, %v928
    // Predicated region
    $region26: #{tpu_custom_call.1} parent=1 // pred_check
      _
    $region27: #{tpu_custom_call.1} parent=1 // pred_check_branch
      %939 = sbr.rel (0) target = $region29
    $region28: #{tpu_custom_call.1} parent=1 // pred_region
      %s941 = ssub.s32 32, 32
      %942 = vsyncadd [#allocation6], %s941
      %s944 = sshll.u32 [#allocation7], 4
      %s945 = int_to_ptr.vmem [resolvable:$true] %s944
      %947 = dma.vmem_to_hbm [thread:$0]  %s945, 32, %s4, [#allocation6]
    $region29: #{tpu_custom_call.1} parent=1 // pred_fallthru
      _
    // Predicated region
    $region30: #{tpu_custom_call.1} parent=1 // pred_check
      _
    $region31: #{tpu_custom_call.1} parent=1 // pred_check_branch
      %949 = sbr.rel (0) target = $region33
    $region32: #{tpu_custom_call.1} parent=1 // pred_region
      %950 = dma.done [#allocation6], 32
    $region33: #{tpu_custom_call.1} parent=1 // pred_fallthru
      _
    %951 = vsyncpa [#allocation5], 1
    %952 = vsyncpa [#allocation6], 1

</llo_original>
